<compile_context>
chip_gen: v7x
topology: tpu7x:2x2x1
jax: 0.10.0
libtpu: 0.0.40
codegen_flags: <defaults>
</compile_context>

<pallas_src>
import math
import functools

import jax
import jax.numpy as jnp
from jax.experimental import pallas as pl
from jax.experimental.pallas import tpu as pltpu


def _choose_row_block(seq_len, hidden, *, cap=256, vmem_budget_bytes=10 * 1024 * 1024):
    """Largest power-of-two row block <= cap that divides seq_len and fits VMEM.

    Live VMEM per grid step ~= 5 * s_block * H * 4 bytes
      (gather_buf x1 + auto double-buffered pos x2 + auto double-buffered out x2).
    Per-grid-step overhead (~0.35 us) is already amortized at s_block=128-256;
    larger blocks only bloat the unrolled DMA-issue loop and VMEM footprint.
    """
    bytes_per_row = 5 * hidden * 4
    max_rows = max(8, vmem_budget_bytes // bytes_per_row)
    limit = min(cap, max_rows)
    for cand in (256, 128, 64, 32, 16, 8):
        if cand <= limit and cand <= seq_len and seq_len % cand == 0:
            return cand
    return 8


def _gather_embed_kernel(ids_ref, wemb_hbm, pos_ref, out_ref,
                         gather_buf, copy_sem, *, scale, s_block, seq_len):
    # ids_ref:    (B*S,)        int32  SMEM (scalar prefetch)
    # wemb_hbm:   (V, H)        f32    raw HBM ref (memory_space=pl.ANY)
    # pos_ref:    (s_block, H)  f32    positional rows for this seq chunk; its block
    #                                  index depends only on the s axis, so with the
    #                                  batch axis innermost it is fetched once per
    #                                  chunk and stays VMEM-resident across the batch.
    # out_ref:    (s_block, H)  f32    lane-dense output block
    # gather_buf: (s_block, H)  f32    VMEM scratch for gathered embedding rows
    # copy_sem:   ()                   single shared DMA semaphore
    s = pl.program_id(0)
    b = pl.program_id(1)
    base = b * seq_len + s * s_block

    # Issue every row-gather DMA against ONE shared semaphore so all s_block small
    # copies overlap.  s_block is a compile-time constant -> static unrolled loop.
    for r in range(s_block):
        tok = ids_ref[base + r]
        pltpu.make_async_copy(
            wemb_hbm.at[pl.ds(tok, 1)],       # (1, H) row of the HBM table
            gather_buf.at[pl.ds(r, 1)],       # (1, H) row of the VMEM scratch
            copy_sem,
        ).start()

    # Single aggregate wait: the DMA semaphore counts destination bytes, so one
    # wait on a descriptor covering the whole (s_block, H) destination consumes
    # exactly the completions of all s_block row copies.  The src of this
    # descriptor is never read -- .wait() only uses the dst size + semaphore.
    pltpu.make_async_copy(gather_buf, gather_buf, copy_sem).wait()

    # Fused epilogue on the VPU, kept in f32 (v5e has no bf16 VALU).
    # TODO(synk): dropout omitted -- eval/inference semantics (identity).
    out_ref[...] = (gather_buf[...] * scale + pos_ref[...]).astype(out_ref.dtype)


def transformer_embedding(input_ids, word_emb, pos_emb):
    """input_ids: (B, S) int; word_emb: (V, H) f32; pos_emb: (max_len, H) f32."""
    B, S = input_ids.shape
    V, H = word_emb.shape
    assert S <= pos_emb.shape[0], "sequence length exceeds max_length"
    assert S % 8 == 0, "kernel expects the sequence length padded to a multiple of 8"
    # NOTE: for best performance H should be a multiple of 128 (unmasked lane-dense
    # stores); other H still run correctly but use masked partial stores.
    # NOTE: ids are scalar-prefetched into SMEM (pads to next_pow2(4*B*S) bytes);
    # for B*S beyond ~128K tokens, switch to per-block id DMAs instead.

    s_block = _choose_row_block(S, H)
    n_sblk = S // s_block
    pos_slice = pos_emb[:S]                       # (S, H) static slice (glue)
    scale = float(math.sqrt(float(H)))
    ids_flat = input_ids.reshape(B * S).astype(jnp.int32)

    # Explicit VMEM limit sized from the actual footprint (headroom x2), clamped
    # to stay comfortably inside v7x's 64 MiB physical / v5e's 128 MiB.
    vmem_footprint = 5 * s_block * H * 4
    vmem_limit = int(min(32 * 1024 * 1024, max(8 * 1024 * 1024, 2 * vmem_footprint)))

    kernel = functools.partial(_gather_embed_kernel,
                               scale=scale, s_block=s_block, seq_len=S)

    out_flat = pl.pallas_call(
        kernel,
        out_shape=jax.ShapeDtypeStruct((B * S, H), jnp.float32),
        grid_spec=pltpu.PrefetchScalarGridSpec(
            num_scalar_prefetch=1,                # ids land in SMEM, feed index_maps
            # Batch innermost: the pos block index only depends on s, so Pallas
            # fetches each pos chunk once instead of B times.  Leading parallel
            # axis (n_sblk) is the larger one for an even 2-TC split on v7x.
            grid=(n_sblk, B),
            in_specs=[
                # Word-embedding table stays in HBM; rows are DMA-gathered.
                pl.BlockSpec(memory_space=pl.ANY),
                # Positional rows for this sequence chunk (lane-dense 2D block).
                pl.BlockSpec((s_block, H), lambda s, b, ids: (s, 0)),
            ],
            # Flattened (B*S, H) output, lane-dense (s_block, H) blocks.
            out_specs=pl.BlockSpec((s_block, H),
                                   lambda s, b, ids: (b * n_sblk + s, 0)),
            scratch_shapes=[
                pltpu.VMEM((s_block, H), word_emb.dtype),
                pltpu.SemaphoreType.DMA(()),      # one shared DMA semaphore
            ],
        ),
        compiler_params=pltpu.CompilerParams(
            dimension_semantics=("parallel", "parallel"),
            vmem_limit_bytes=vmem_limit),
        cost_estimate=pl.CostEstimate(
            flops=2 * B * S * H,                  # scale-mul + add
            transcendentals=0,
            # gather read + out write + pos (resident across batch) + ids
            bytes_accessed=(2 * B * S * H + S * H + B * S) * 4),
    )(ids_flat, word_emb, pos_slice)

    return out_flat.reshape(B, S, H)


def get_positional_encoding(max_length, hidden_size):
    """Matches TransformerEmbedding.get_positional_encoding."""
    position = jnp.arange(0, max_length, dtype=jnp.float32)[:, None]          # (L, 1)
    div_term = jnp.exp(jnp.arange(0, hidden_size, 2, dtype=jnp.float32)
                       * (-math.log(10000.0) / hidden_size))                   # (H/2,)
    angles = position * div_term                                               # (L, H/2)
    pe = jnp.zeros((max_length, hidden_size), dtype=jnp.float32)
    pe = pe.at[:, 0::2].set(jnp.sin(angles))
    pe = pe.at[:, 1::2].set(jnp.cos(angles))
    return pe


if __name__ == "__main__":
    # Small shapes consistent with the module's forward:
    B, S = 2, 8            # batch, sequence length
    V, H = 8, 32           # vocab_size, d_model
    MAX_LEN = 16           # max_length
    PAD_IDX = 0

    key = jax.random.PRNGKey(0)
    k_ids, k_emb = jax.random.split(key)

    # Deterministic parameter init (nn.Embedding ~ N(0,1), padding row zeroed).
    word_emb = jax.random.normal(k_emb, (V, H), dtype=jnp.float32)
    word_emb = word_emb.at[PAD_IDX].set(0.0)
    pos_emb = get_positional_encoding(MAX_LEN, H)

    input_ids = jax.random.randint(k_ids, (B, S), 0, V, dtype=jnp.int32)

    out = transformer_embedding(input_ids, word_emb, pos_emb)
    out = jax.block_until_ready(out)

    # Pure-JAX reference check (eval-mode dropout == identity).
    ref = word_emb[input_ids] * math.sqrt(float(H)) + pos_emb[:S][None, :, :]
    assert out.shape == (B, S, H)
    assert jnp.allclose(out, ref, atol=1e-5), "mismatch vs reference"

    print("KERNEL_OK")
</pallas_src>

<mosaic_0001>
module attributes {stable_mosaic.version = 11 : i64} {
  func.func @_gather_embed_kernel(%arg0: i32, %arg1: i32, %arg2: memref<16xi32, #tpu.memory_space<smem>>, %arg3: memref<8x32xf32, #tpu.memory_space<any>>, %arg4: memref<8x32xf32, #tpu.memory_space<vmem>>, %arg5: memref<8x32xf32, #tpu.memory_space<vmem>>, %arg6: memref<8x32xf32, #tpu.memory_space<vmem>>, %arg7: memref<!tpu.dma_semaphore, #tpu.memory_space<semaphore_mem>>) attributes {dimension_semantics = [#tpu.dimension_semantics<parallel>, #tpu.dimension_semantics<parallel>], iteration_bounds = array<i64: 1, 2>, scalar_prefetch = 1 : i64, scratch_operands = 2 : i64, tpu.core_type = #tpu.core_type<tc>, window_params = [{}, {transform_indices = @transform_1, window_bounds = array<i64: 8, 32>}, {transform_indices = @transform_2, window_bounds = array<i64: 8, 32>}]} {
    %c8_i32 = arith.constant 8 : i32
    %0 = arith.muli %arg1, %c8_i32 : i32
    %c8_i32_0 = arith.constant 8 : i32
    %1 = arith.muli %arg0, %c8_i32_0 : i32
    %2 = arith.addi %0, %1 : i32
    %c0_i32 = arith.constant 0 : i32
    %3 = arith.addi %2, %c0_i32 : i32
    %4 = arith.index_cast %3 : i32 to index
    %5 = memref.load %arg2[%4] : memref<16xi32, #tpu.memory_space<smem>>
    %c0_i32_1 = arith.constant 0 : i32
    %6 = tpu.memref_slice %arg3[%5, %c0_i32_1] : memref<8x32xf32, #tpu.memory_space<any>> -> memref<1x32xf32, #tpu.memory_space<any>>
    %c0_i32_2 = arith.constant 0 : i32
    %c0_i32_3 = arith.constant 0 : i32
    %7 = tpu.memref_slice %arg6[%c0_i32_2, %c0_i32_3] : memref<8x32xf32, #tpu.memory_space<vmem>> -> memref<1x32xf32, #tpu.memory_space<vmem>>
    tpu.enqueue_dma source(%6 : memref<1x32xf32, #tpu.memory_space<any>>) target(%7 : memref<1x32xf32, #tpu.memory_space<vmem>>) target_semaphore(%arg7 : memref<!tpu.dma_semaphore, #tpu.memory_space<semaphore_mem>>)
    %c1_i32 = arith.constant 1 : i32
    %8 = arith.addi %2, %c1_i32 : i32
    %9 = arith.index_cast %8 : i32 to index
    %10 = memref.load %arg2[%9] : memref<16xi32, #tpu.memory_space<smem>>
    %c0_i32_4 = arith.constant 0 : i32
    %11 = tpu.memref_slice %arg3[%10, %c0_i32_4] : memref<8x32xf32, #tpu.memory_space<any>> -> memref<1x32xf32, #tpu.memory_space<any>>
    %c1_i32_5 = arith.constant 1 : i32
    %c0_i32_6 = arith.constant 0 : i32
    %12 = tpu.memref_slice %arg6[%c1_i32_5, %c0_i32_6] : memref<8x32xf32, #tpu.memory_space<vmem>> -> memref<1x32xf32, #tpu.memory_space<vmem>>
    tpu.enqueue_dma source(%11 : memref<1x32xf32, #tpu.memory_space<any>>) target(%12 : memref<1x32xf32, #tpu.memory_space<vmem>>) target_semaphore(%arg7 : memref<!tpu.dma_semaphore, #tpu.memory_space<semaphore_mem>>)
    %c2_i32 = arith.constant 2 : i32
    %13 = arith.addi %2, %c2_i32 : i32
    %14 = arith.index_cast %13 : i32 to index
    %15 = memref.load %arg2[%14] : memref<16xi32, #tpu.memory_space<smem>>
    %c0_i32_7 = arith.constant 0 : i32
    %16 = tpu.memref_slice %arg3[%15, %c0_i32_7] : memref<8x32xf32, #tpu.memory_space<any>> -> memref<1x32xf32, #tpu.memory_space<any>>
    %c2_i32_8 = arith.constant 2 : i32
    %c0_i32_9 = arith.constant 0 : i32
    %17 = tpu.memref_slice %arg6[%c2_i32_8, %c0_i32_9] : memref<8x32xf32, #tpu.memory_space<vmem>> -> memref<1x32xf32, #tpu.memory_space<vmem>>
    tpu.enqueue_dma source(%16 : memref<1x32xf32, #tpu.memory_space<any>>) target(%17 : memref<1x32xf32, #tpu.memory_space<vmem>>) target_semaphore(%arg7 : memref<!tpu.dma_semaphore, #tpu.memory_space<semaphore_mem>>)
    %c3_i32 = arith.constant 3 : i32
    %18 = arith.addi %2, %c3_i32 : i32
    %19 = arith.index_cast %18 : i32 to index
    %20 = memref.load %arg2[%19] : memref<16xi32, #tpu.memory_space<smem>>
    %c0_i32_10 = arith.constant 0 : i32
    %21 = tpu.memref_slice %arg3[%20, %c0_i32_10] : memref<8x32xf32, #tpu.memory_space<any>> -> memref<1x32xf32, #tpu.memory_space<any>>
    %c3_i32_11 = arith.constant 3 : i32
    %c0_i32_12 = arith.constant 0 : i32
    %22 = tpu.memref_slice %arg6[%c3_i32_11, %c0_i32_12] : memref<8x32xf32, #tpu.memory_space<vmem>> -> memref<1x32xf32, #tpu.memory_space<vmem>>
    tpu.enqueue_dma source(%21 : memref<1x32xf32, #tpu.memory_space<any>>) target(%22 : memref<1x32xf32, #tpu.memory_space<vmem>>) target_semaphore(%arg7 : memref<!tpu.dma_semaphore, #tpu.memory_space<semaphore_mem>>)
    %c4_i32 = arith.constant 4 : i32
    %23 = arith.addi %2, %c4_i32 : i32
    %24 = arith.index_cast %23 : i32 to index
    %25 = memref.load %arg2[%24] : memref<16xi32, #tpu.memory_space<smem>>
    %c0_i32_13 = arith.constant 0 : i32
    %26 = tpu.memref_slice %arg3[%25, %c0_i32_13] : memref<8x32xf32, #tpu.memory_space<any>> -> memref<1x32xf32, #tpu.memory_space<any>>
    %c4_i32_14 = arith.constant 4 : i32
    %c0_i32_15 = arith.constant 0 : i32
    %27 = tpu.memref_slice %arg6[%c4_i32_14, %c0_i32_15] : memref<8x32xf32, #tpu.memory_space<vmem>> -> memref<1x32xf32, #tpu.memory_space<vmem>>
    tpu.enqueue_dma source(%26 : memref<1x32xf32, #tpu.memory_space<any>>) target(%27 : memref<1x32xf32, #tpu.memory_space<vmem>>) target_semaphore(%arg7 : memref<!tpu.dma_semaphore, #tpu.memory_space<semaphore_mem>>)
    %c5_i32 = arith.constant 5 : i32
    %28 = arith.addi %2, %c5_i32 : i32
    %29 = arith.index_cast %28 : i32 to index
    %30 = memref.load %arg2[%29] : memref<16xi32, #tpu.memory_space<smem>>
    %c0_i32_16 = arith.constant 0 : i32
    %31 = tpu.memref_slice %arg3[%30, %c0_i32_16] : memref<8x32xf32, #tpu.memory_space<any>> -> memref<1x32xf32, #tpu.memory_space<any>>
    %c5_i32_17 = arith.constant 5 : i32
    %c0_i32_18 = arith.constant 0 : i32
    %32 = tpu.memref_slice %arg6[%c5_i32_17, %c0_i32_18] : memref<8x32xf32, #tpu.memory_space<vmem>> -> memref<1x32xf32, #tpu.memory_space<vmem>>
    tpu.enqueue_dma source(%31 : memref<1x32xf32, #tpu.memory_space<any>>) target(%32 : memref<1x32xf32, #tpu.memory_space<vmem>>) target_semaphore(%arg7 : memref<!tpu.dma_semaphore, #tpu.memory_space<semaphore_mem>>)
    %c6_i32 = arith.constant 6 : i32
    %33 = arith.addi %2, %c6_i32 : i32
    %34 = arith.index_cast %33 : i32 to index
    %35 = memref.load %arg2[%34] : memref<16xi32, #tpu.memory_space<smem>>
    %c0_i32_19 = arith.constant 0 : i32
    %36 = tpu.memref_slice %arg3[%35, %c0_i32_19] : memref<8x32xf32, #tpu.memory_space<any>> -> memref<1x32xf32, #tpu.memory_space<any>>
    %c6_i32_20 = arith.constant 6 : i32
    %c0_i32_21 = arith.constant 0 : i32
    %37 = tpu.memref_slice %arg6[%c6_i32_20, %c0_i32_21] : memref<8x32xf32, #tpu.memory_space<vmem>> -> memref<1x32xf32, #tpu.memory_space<vmem>>
    tpu.enqueue_dma source(%36 : memref<1x32xf32, #tpu.memory_space<any>>) target(%37 : memref<1x32xf32, #tpu.memory_space<vmem>>) target_semaphore(%arg7 : memref<!tpu.dma_semaphore, #tpu.memory_space<semaphore_mem>>)
    %c7_i32 = arith.constant 7 : i32
    %38 = arith.addi %2, %c7_i32 : i32
    %39 = arith.index_cast %38 : i32 to index
    %40 = memref.load %arg2[%39] : memref<16xi32, #tpu.memory_space<smem>>
    %c0_i32_22 = arith.constant 0 : i32
    %41 = tpu.memref_slice %arg3[%40, %c0_i32_22] : memref<8x32xf32, #tpu.memory_space<any>> -> memref<1x32xf32, #tpu.memory_space<any>>
    %c7_i32_23 = arith.constant 7 : i32
    %c0_i32_24 = arith.constant 0 : i32
    %42 = tpu.memref_slice %arg6[%c7_i32_23, %c0_i32_24] : memref<8x32xf32, #tpu.memory_space<vmem>> -> memref<1x32xf32, #tpu.memory_space<vmem>>
    tpu.enqueue_dma source(%41 : memref<1x32xf32, #tpu.memory_space<any>>) target(%42 : memref<1x32xf32, #tpu.memory_space<vmem>>) target_semaphore(%arg7 : memref<!tpu.dma_semaphore, #tpu.memory_space<semaphore_mem>>)
    tpu.wait_dma2 semaphore(%arg7 : memref<!tpu.dma_semaphore, #tpu.memory_space<semaphore_mem>>) src(%arg6 : memref<8x32xf32, #tpu.memory_space<vmem>>) dst(%arg6 : memref<8x32xf32, #tpu.memory_space<vmem>>)
    %c0 = arith.constant 0 : index
    %c0_25 = arith.constant 0 : index
    %43 = vector.load %arg6[%c0, %c0_25] : memref<8x32xf32, #tpu.memory_space<vmem>>, vector<8x32xf32>
    %cst = arith.constant 5.65685415 : f32
    %44 = vector.broadcast %cst : f32 to vector<8x32xf32>
    %45 = arith.mulf %43, %44 : vector<8x32xf32>
    %c0_26 = arith.constant 0 : index
    %c0_27 = arith.constant 0 : index
    %46 = vector.load %arg4[%c0_26, %c0_27] : memref<8x32xf32, #tpu.memory_space<vmem>>, vector<8x32xf32>
    %47 = arith.addf %45, %46 : vector<8x32xf32>
    %c0_28 = arith.constant 0 : index
    %c0_29 = arith.constant 0 : index
    %48 = vector.load %arg5[%c0_28, %c0_29] : memref<8x32xf32, #tpu.memory_space<vmem>>, vector<8x32xf32>
    tpu.vector_store %arg5[%c0_28, %c0_29], %47 {strides = array<i32>} : memref<8x32xf32, #tpu.memory_space<vmem>>, vector<8x32xf32>,
    return
  }
  func.func @transform_1(%arg0: i32, %arg1: i32, %arg2: memref<16xi32, #tpu.memory_space<smem>>) -> (i32, i32) {
    %c0_i32 = arith.constant 0 : i32
    %c0_i32_0 = arith.constant 0 : i32
    return %arg0, %c0_i32 : i32, i32
  }
  func.func @transform_2(%arg0: i32, %arg1: i32, %arg2: memref<16xi32, #tpu.memory_space<smem>>) -> (i32, i32) {
    %c1_i32 = arith.constant 1 : i32
    %0 = arith.muli %arg1, %c1_i32 : i32
    %1 = arith.addi %0, %arg0 : i32
    %c0_i32 = arith.constant 0 : i32
    %c0_i32_0 = arith.constant 0 : i32
    return %1, %c0_i32 : i32, i32
  }
}

</mosaic_0001>

<llo_original>
// kernel: tpu_custom_call.1
$region0: #{tpu_custom_call.1}
  #allocation0 [shape = 'u32[]', space=smem, size = 0x4, offset = 0x4, fixed_abs, tag = 'smem constant byte address 0x4 - core index']
  #allocation1 [shape = 'u32[144,128]{1,0:T(1,128)}', space=vmem, size = 0x12000, scoped, tag = 'internal scratch']
  #allocation2 [shape = 'f32[8,32]{1,0:T(8,128)}', space=vmem, size = 0x1000, scoped, tag = 'scratch operand']
  #allocation3 [shape = 's32[1]{0}', space=sflag, size = 0x4, scoped, tag = 'scratch operand']
  #allocation4 [shape = 's32[1]{0}', space=sflag, size = 0x4, scoped, tag = 'scoped memory for tpu_custom_call.1']
  #allocation5 [shape = 'u8[512]{0}', space=smem, size = 0x200, scoped, tag = 'prefetched SMEM operand 0']
  #allocation10 [shape = 's32[]', space=sflag, size = 0x4, offset = 0, fixed_abs, tag = 'sflag constant byte address 0x0 - dummy sync flag']
  #allocation11 [shape = 's32[]', space=sflag, size = 0x4, offset = 0, fixed_abs, tag = 'sflag constant byte address 0x0 - dummy sync flag']
  #allocation12 [shape = 'u32[]', space=smem, size = 0x4, offset = 0x44, fixed_abs, tag = 'smem constant byte address 0x44 - assertion arg 0']
  #allocation13 [shape = 'u32[]', space=smem, size = 0x4, offset = 0x48, fixed_abs, tag = 'smem constant byte address 0x48 - assertion arg 1']
  #allocation14 [shape = 's32[]', space=sflag, size = 0x4, offset = 0, fixed_abs, tag = 'sflag constant byte address 0x0 - dummy sync flag']
  #allocation15 [shape = 's32[]', space=sflag, size = 0x4, offset = 0, fixed_abs, tag = 'sflag constant byte address 0x0 - dummy sync flag']
  #allocation16 [shape = 's32[]', space=sflag, size = 0x4, offset = 0, fixed_abs, tag = 'sflag constant byte address 0x0 - dummy sync flag']
  #allocation17 [shape = 's32[]', space=sflag, size = 0x4, offset = 0, fixed_abs, tag = 'sflag constant byte address 0x0 - dummy sync flag']
  #allocation18 [shape = 's32[]', space=sflag, size = 0x4, offset = 0, fixed_abs, tag = 'sflag constant byte address 0x0 - dummy sync flag']
  #allocation19 [shape = 's32[]', space=sflag, size = 0x4, offset = 0, fixed_abs, tag = 'sflag constant byte address 0x0 - dummy sync flag']
  #allocation20 [shape = 's32[]', space=sflag, size = 0x4, offset = 0, fixed_abs, tag = 'sflag constant byte address 0x0 - dummy sync flag']
  #allocation21 [shape = 's32[]', space=sflag, size = 0x4, offset = 0, fixed_abs, tag = 'sflag constant byte address 0x0 - dummy sync flag']
  #allocation22 [shape = 's32[]', space=sflag, size = 0x4, offset = 0, fixed_abs, tag = 'sflag constant byte address 0x0 - dummy sync flag']
  #allocation23 [shape = 's32[]', space=sflag, size = 0x4, offset = 0, fixed_abs, tag = 'sflag constant byte address 0x0 - dummy sync flag']
  #allocation24 [shape = 's32[]', space=sflag, size = 0x4, offset = 0, fixed_abs, tag = 'sflag constant byte address 0x0 - dummy sync flag']
  #allocation25 [shape = 's32[]', space=sflag, size = 0x4, offset = 0, fixed_abs, tag = 'sflag constant byte address 0x0 - dummy sync flag']
  #allocation26 [shape = 's32[]', space=sflag, size = 0x4, offset = 0, fixed_abs, tag = 'sflag constant byte address 0x0 - dummy sync flag']
  #allocation27 [shape = 's32[]', space=sflag, size = 0x4, offset = 0, fixed_abs, tag = 'sflag constant byte address 0x0 - dummy sync flag']
  %s0 = inlined_call_operand.hbm [shape: s32[16], index: 0, kind: input, shape index: {}]
  %s1 = inlined_call_operand.hbm [shape: f32[8,32], index: 1, kind: input, shape index: {}]
  %s2 = inlined_call_operand.hbm [shape: f32[8,32], index: 2, kind: input, shape index: {}]
  %s3 = inlined_call_operand.hbm [shape: f32[16,32], index: 3, kind: output, shape index: {}]
  %s4 = sld [smem:[#allocation0]]
  $region73: #{tpu_custom_call.1} parent=0
    _
  %s6 = ssub.s32 1, %s4
  %s7 = scalar_select 0, %s6, %s4
  %9 = dma.hbm_to_smem %s0, 16, [#allocation5], [#allocation4]
  %10 = dma.done [#allocation4], 16
  %11 = sfence
  $region1: #{tpu_custom_call.1} parent=0
    #allocation6 [shape = 'u8[4096]{0}', space=vmem, size = 0x1000, scoped, tag = 'input window, operand 2, single buffered']
    #allocation7 [shape = 's32[2]{0}', space=sflag, size = 0x8, scoped, tag = 'scoped memory for tpu_custom_call.1']
    #allocation8 [shape = 's32[2]{0}', space=sflag, size = 0x8, scoped, tag = 'scoped memory for tpu_custom_call.1']
    #allocation9 [shape = 'u8[8192]{0}', space=vmem, size = 0x2000, scoped, tag = 'output window, operand 0']
    %12 = vsyncpa [#allocation7], 0
    %13 = vsyncpa [#allocation8], 0
    %s14 = scalar_lea.sflag [#allocation8], 1
    %15 = vsyncpa %s14, 0
    loop: start=0, step=1, limit=4
    $region2: #{tpu_custom_call.1} parent=1 // loop_pre_header
      _
    $region3: #{tpu_custom_call.1} parent=1 // loop_header
      %s17 = sphi 0, %s21
      %p18 = scmp.ge.s32.totalorder %s17, 4
      %s24 = sphi 0, %s36
      %s25 = sphi 0, %s32
      %s26 = sphi 0, %s24
      %s27 = sphi 0, %s25
      %s28 = sphi 0, %s26
      %s29 = sphi 0, %s27
      %s39 = sphi 0, %s41
      %s42 = sphi 0, %s39
      %s43 = sphi 0, %s42
      %s59 = sphi 0, %s43
      %s67 = sphi 0, %s69
      %s70 = sphi 0, %s67
      %s71 = sphi 0, %s70
      %s87 = sphi 0, %s71
    $region4: #{tpu_custom_call.1} parent=1 // loop_header_branch
      %20 = sbr.rel (%p18) target = $region8
    $region5: #{tpu_custom_call.1} parent=1 // loop_body
      %s22 = ssub.s32 %s17, 1
      %s23 = ssub.s32 %s17, 2
      %s30 = sadd.s32 1, %s25
      %p31 = scmp.ge.s32.totalorder %s30, 2
      %s32 = scalar_select %p31, 0, %s30
      %s33 = sadd.s32 1, %s24
      %s34 = scalar_select %p31, %s33, %s24
      %p35 = scmp.ge.s32.totalorder %s34, 1
      %s36 = scalar_select %p35, 0, %s34
      %s37 = ssub.s32 %s24, %s36
      %p38 = scmp.eq.s32.totalorder %s37, 0
      %s40 = sadd.s32 %s39, 1
      %s41 = scalar_select %p38, %s39, %s40
      %p44 = pneg %p38
      %p45 = scmp.eq.s32.totalorder %s17, 1
      %p46 = por %p44, %p45
      %p47 = scmp.ne.s32.totalorder %s39, %s42
      %p48 = scmp.eq.s32.totalorder %s17, 0
      %p49 = por %p47, %p48
      %p50 = scmp.ne.s32.totalorder %s39, %s42
      %p51 = scmp.eq.s32.totalorder %s22, 1
      %p52 = por %p50, %p51
      %p53 = scmp.ne.s32.totalorder %s42, %s43
      %p54 = scmp.eq.s32.totalorder %s22, 0
      %p55 = por %p53, %p54
      %p56 = scmp.ne.s32.totalorder %s42, %s43
      %p57 = scmp.eq.s32.totalorder %s23, 1
      %p58 = por %p56, %p57
      %p60 = scmp.ne.s32.totalorder %s43, %s59
      %p61 = scmp.eq.s32.totalorder %s23, 0
      %p62 = por %p60, %p61
      %s63 = sadd.s32 %s25, %s24
      %s64 = sadd.s32 %s32, %s36
      %s65 = ssub.s32 %s63, %s64
      %p66 = scmp.eq.s32.totalorder %s65, 0
      %s68 = sadd.s32 %s67, 1
      %s69 = scalar_select %p66, %s67, %s68
      %p72 = pneg %p66
      %p73 = scmp.eq.s32.totalorder %s17, 1
      %p74 = por %p72, %p73
      %p75 = scmp.ne.s32.totalorder %s67, %s70
      %p76 = scmp.eq.s32.totalorder %s17, 0
      %p77 = por %p75, %p76
      %p78 = scmp.ne.s32.totalorder %s67, %s70
      %p79 = scmp.eq.s32.totalorder %s22, 1
      %p80 = por %p78, %p79
      %p81 = scmp.ne.s32.totalorder %s70, %s71
      %p82 = scmp.eq.s32.totalorder %s22, 0
      %p83 = por %p81, %p82
      %p84 = scmp.ne.s32.totalorder %s70, %s71
      %p85 = scmp.eq.s32.totalorder %s23, 1
      %p86 = por %p84, %p85
      %p88 = scmp.ne.s32.totalorder %s71, %s87
      %p89 = scmp.eq.s32.totalorder %s23, 0
      %p90 = por %p88, %p89
      %p91 = scmp.le.s32.totalorder 1, %s17
      %p92 = scmp.lt.s32.totalorder %s17, 3
      %p93 = pnand %p91, %p92
      %p94 = pneg %p93
      // Predicated region
      $region9: #{tpu_custom_call.1} parent=5 // pred_check
        _
      $region10: #{tpu_custom_call.1} parent=5 // pred_check_branch
        %96 = sbr.rel (%p93) target = $region12
      $region11: #{tpu_custom_call.1} parent=5 // pred_region
        %s97 = ssub.s32 %s17, 1
        // Predicated region
        $region13: #{tpu_custom_call.1} parent=11 // pred_check
          %p98 = pneg %p55
        $region14: #{tpu_custom_call.1} parent=11 // pred_check_branch
          %100 = sbr.rel (%p98) target = $region16
        $region15: #{tpu_custom_call.1} parent=11 // pred_region
          %s102 = ssub.s32 128, 128
          %103 = vsyncadd [#allocation7], %s102
          %s104 = smul.addr %s26, 128
          %s105 = scalar_lea.hbm %s2, %s104
          %s107 = sshll.u32 [#allocation6], 4
          %s108 = int_to_ptr.vmem [resolvable:$true] %s107
          %110 = dma.hbm_to_vmem [thread:$0]  %s105, 128, %s108, [#allocation7]
        $region16: #{tpu_custom_call.1} parent=11 // pred_fallthru
          _
      $region12: #{tpu_custom_call.1} parent=5 // pred_fallthru
        _
      %p111 = scmp.lt.s32.totalorder %s17, 2
      // Predicated region
      $region17: #{tpu_custom_call.1} parent=5 // pred_check
        %p112 = pneg %p111
      $region18: #{tpu_custom_call.1} parent=5 // pred_check_branch
        %114 = sbr.rel (%p112) target = $region20
      $region19: #{tpu_custom_call.1} parent=5 // pred_region
        _
      $region20: #{tpu_custom_call.1} parent=5 // pred_fallthru
        _
      %p115 = scmp.le.s32.totalorder 1, %s17
      %p116 = scmp.lt.s32.totalorder %s17, 3
      %p117 = pnand %p115, %p116
      %p118 = pneg %p117
      // Predicated region
      $region21: #{tpu_custom_call.1} parent=5 // pred_check
        _
      $region22: #{tpu_custom_call.1} parent=5 // pred_check_branch
        %120 = sbr.rel (%p117) target = $region24
      $region23: #{tpu_custom_call.1} parent=5 // pred_region
        %s121 = ssub.s32 %s17, 1
        // Predicated region
        $region25: #{tpu_custom_call.1} parent=23 // pred_check
          %p122 = pneg %p55
        $region26: #{tpu_custom_call.1} parent=23 // pred_check_branch
          %124 = sbr.rel (%p122) target = $region28
        $region27: #{tpu_custom_call.1} parent=23 // pred_region
          %125 = dma.done [#allocation7], 128
        $region28: #{tpu_custom_call.1} parent=23 // pred_fallthru
          _
        %p126 = pneg %p55
        %p127 = pneg %p52
        %p128 = pneg %p83
        %p129 = pneg %p80
        %s130 = sand.u32 %s70, 1
        %s131 = scalar_lea.sflag [#allocation8], %s130
        %s132 = sand.u32 %s70, 1
        %s133 = smul.addr %s132, 8
        %s134 = scalar_lea.vmem [#allocation9], %s133
        %s135 = sadd.s32 %s27, %s26
        %s136 = smul.u32 %s27, 8
        %s137 = smul.u32 %s26, 8
        %s138 = sadd.s32 %s136, %s137
        %s139 = sld [smem:[#allocation5 + %s138]]
        %s140 = smul.addr %s139, 16
        %s141 = scalar_lea.hbm %s1, %s140
        // Predicated region
        $region29: #{tpu_custom_call.1} parent=23 // pred_check
          _
        $region30: #{tpu_custom_call.1} parent=23 // pred_check_branch
          %143 = sbr.rel target = $region32
        $region31: #{tpu_custom_call.1} parent=23 // pred_region
          %144 = sst [smem:[#allocation12]] [#allocation11]
          %145 = sst [smem:[#allocation13]] [#allocation10]
        $region32: #{tpu_custom_call.1} parent=23 // pred_fallthru
          _
        %147 = shalt.err (0)
        %s149 = sshll.u32 [#allocation2], 4
        %s150 = int_to_ptr.vmem [resolvable:$true] %s149
        %152 = dma.hbm_to_vmem [thread:$0]  %s141, 16, %s150, [#allocation3]
        %s153 = sadd.s32 %s138, 1
        %s154 = sld [smem:[#allocation5 + %s153]]
        %s155 = smul.addr %s154, 16
        %s156 = scalar_lea.hbm %s1, %s155
        %s157 = scalar_lea.vmem [#allocation2], 1
        // Predicated region
        $region33: #{tpu_custom_call.1} parent=23 // pred_check
          _
        $region34: #{tpu_custom_call.1} parent=23 // pred_check_branch
          %159 = sbr.rel target = $region36
        $region35: #{tpu_custom_call.1} parent=23 // pred_region
          %160 = sst [smem:[#allocation12]] [#allocation15]
          %161 = sst [smem:[#allocation13]] [#allocation14]
        $region36: #{tpu_custom_call.1} parent=23 // pred_fallthru
          _
        %163 = shalt.err (0)
        %s165 = sshll.u32 %s157, 4
        %s166 = int_to_ptr.vmem [resolvable:$true] %s165
        %168 = dma.hbm_to_vmem [thread:$0]  %s156, 16, %s166, [#allocation3]
        %s169 = sadd.s32 %s138, 2
        %s170 = sld [smem:[#allocation5 + %s169]]
        %s171 = smul.addr %s170, 16
        %s172 = scalar_lea.hbm %s1, %s171
        %s173 = scalar_lea.vmem [#allocation2], 2
        // Predicated region
        $region37: #{tpu_custom_call.1} parent=23 // pred_check
          _
        $region38: #{tpu_custom_call.1} parent=23 // pred_check_branch
          %175 = sbr.rel target = $region40
        $region39: #{tpu_custom_call.1} parent=23 // pred_region
          %176 = sst [smem:[#allocation12]] [#allocation17]
          %177 = sst [smem:[#allocation13]] [#allocation16]
        $region40: #{tpu_custom_call.1} parent=23 // pred_fallthru
          _
        %179 = shalt.err (0)
        %s181 = sshll.u32 %s173, 4
        %s182 = int_to_ptr.vmem [resolvable:$true] %s181
        %184 = dma.hbm_to_vmem [thread:$0]  %s172, 16, %s182, [#allocation3]
        %s185 = sadd.s32 %s138, 3
        %s186 = sld [smem:[#allocation5 + %s185]]
        %s187 = smul.addr %s186, 16
        %s188 = scalar_lea.hbm %s1, %s187
        %s189 = scalar_lea.vmem [#allocation2], 3
        // Predicated region
        $region41: #{tpu_custom_call.1} parent=23 // pred_check
          _
        $region42: #{tpu_custom_call.1} parent=23 // pred_check_branch
          %191 = sbr.rel target = $region44
        $region43: #{tpu_custom_call.1} parent=23 // pred_region
          %192 = sst [smem:[#allocation12]] [#allocation19]
          %193 = sst [smem:[#allocation13]] [#allocation18]
        $region44: #{tpu_custom_call.1} parent=23 // pred_fallthru
          _
        %195 = shalt.err (0)
        %s197 = sshll.u32 %s189, 4
        %s198 = int_to_ptr.vmem [resolvable:$true] %s197
        %200 = dma.hbm_to_vmem [thread:$0]  %s188, 16, %s198, [#allocation3]
        %s201 = sadd.s32 %s138, 4
        %s202 = sld [smem:[#allocation5 + %s201]]
        %s203 = smul.addr %s202, 16
        %s204 = scalar_lea.hbm %s1, %s203
        %s205 = scalar_lea.vmem [#allocation2], 4
        // Predicated region
        $region45: #{tpu_custom_call.1} parent=23 // pred_check
          _
        $region46: #{tpu_custom_call.1} parent=23 // pred_check_branch
          %207 = sbr.rel target = $region48
        $region47: #{tpu_custom_call.1} parent=23 // pred_region
          %208 = sst [smem:[#allocation12]] [#allocation21]
          %209 = sst [smem:[#allocation13]] [#allocation20]
        $region48: #{tpu_custom_call.1} parent=23 // pred_fallthru
          _
        %211 = shalt.err (0)
        %s213 = sshll.u32 %s205, 4
        %s214 = int_to_ptr.vmem [resolvable:$true] %s213
        %216 = dma.hbm_to_vmem [thread:$0]  %s204, 16, %s214, [#allocation3]
        %s217 = sadd.s32 %s138, 5
        %s218 = sld [smem:[#allocation5 + %s217]]
        %s219 = smul.addr %s218, 16
        %s220 = scalar_lea.hbm %s1, %s219
        %s221 = scalar_lea.vmem [#allocation2], 5
        // Predicated region
        $region49: #{tpu_custom_call.1} parent=23 // pred_check
          _
        $region50: #{tpu_custom_call.1} parent=23 // pred_check_branch
          %223 = sbr.rel target = $region52
        $region51: #{tpu_custom_call.1} parent=23 // pred_region
          %224 = sst [smem:[#allocation12]] [#allocation23]
          %225 = sst [smem:[#allocation13]] [#allocation22]
        $region52: #{tpu_custom_call.1} parent=23 // pred_fallthru
          _
        %227 = shalt.err (0)
        %s229 = sshll.u32 %s221, 4
        %s230 = int_to_ptr.vmem [resolvable:$true] %s229
        %232 = dma.hbm_to_vmem [thread:$0]  %s220, 16, %s230, [#allocation3]
        %s233 = sadd.s32 %s138, 6
        %s234 = sld [smem:[#allocation5 + %s233]]
        %s235 = smul.addr %s234, 16
        %s236 = scalar_lea.hbm %s1, %s235
        %s237 = scalar_lea.vmem [#allocation2], 6
        // Predicated region
        $region53: #{tpu_custom_call.1} parent=23 // pred_check
          _
        $region54: #{tpu_custom_call.1} parent=23 // pred_check_branch
          %239 = sbr.rel target = $region56
        $region55: #{tpu_custom_call.1} parent=23 // pred_region
          %240 = sst [smem:[#allocation12]] [#allocation25]
          %241 = sst [smem:[#allocation13]] [#allocation24]
        $region56: #{tpu_custom_call.1} parent=23 // pred_fallthru
          _
        %243 = shalt.err (0)
        %s245 = sshll.u32 %s237, 4
        %s246 = int_to_ptr.vmem [resolvable:$true] %s245
        %248 = dma.hbm_to_vmem [thread:$0]  %s236, 16, %s246, [#allocation3]
        %s249 = sadd.s32 %s138, 7
        %s250 = sld [smem:[#allocation5 + %s249]]
        %s251 = smul.addr %s250, 16
        %s252 = scalar_lea.hbm %s1, %s251
        %s253 = scalar_lea.vmem [#allocation2], 7
        // Predicated region
        $region57: #{tpu_custom_call.1} parent=23 // pred_check
          _
        $region58: #{tpu_custom_call.1} parent=23 // pred_check_branch
          %255 = sbr.rel target = $region60
        $region59: #{tpu_custom_call.1} parent=23 // pred_region
          %256 = sst [smem:[#allocation12]] [#allocation27]
          %257 = sst [smem:[#allocation13]] [#allocation26]
        $region60: #{tpu_custom_call.1} parent=23 // pred_fallthru
          _
        %259 = shalt.err (0)
        %s261 = sshll.u32 %s253, 4
        %s262 = int_to_ptr.vmem [resolvable:$true] %s261
        %264 = dma.hbm_to_vmem [thread:$0]  %s252, 16, %s262, [#allocation3]
        %s265 = smul.u32 8, 1
        %s266 = sshll.u32 %s265, 4
        %267 = dma.done [#allocation3], %s266
        %v268 = vld [vmem:[#allocation2] sm:$0xff]
        %v269 = vmul.f32 %v268, 5.656854
        %v270 = vld [vmem:[#allocation6] sm:$0xff]
        %v271 = vadd.f32 %v269, %v270
        %vm272 = vcmask 261120
        %273 = vst.msk [vmem:[%s134] sm:$0xff] %vm272, %v271
        %s274 = sand.u32 %s70, 1
        %s275 = scalar_lea.sflag [#allocation8], %s274
        %s276 = sand.u32 %s70, 1
        %s277 = smul.addr %s276, 8
        %s278 = scalar_lea.vmem [#allocation9], %s277
        // Predicated region
        $region61: #{tpu_custom_call.1} parent=23 // pred_check
          %p279 = pneg %p80
        $region62: #{tpu_custom_call.1} parent=23 // pred_check_branch
          %281 = sbr.rel (%p279) target = $region64
        $region63: #{tpu_custom_call.1} parent=23 // pred_region
          %s282 = sadd.s32 %s27, %s26
          %s284 = ssub.s32 128, 128
          %285 = vsyncadd %s275, %s284
          %s286 = smul.addr %s282, 128
          %s287 = scalar_lea.hbm %s3, %s286
          %s289 = sshll.u32 %s278, 4
          %s290 = int_to_ptr.vmem [resolvable:$true] %s289
          %292 = dma.vmem_to_hbm [thread:$0]  %s290, 128, %s287, %s275
        $region64: #{tpu_custom_call.1} parent=23 // pred_fallthru
          _
      $region24: #{tpu_custom_call.1} parent=5 // pred_fallthru
        _
      %p293 = scmp.le.s32.totalorder 2, %s17
      // Predicated region
      $region65: #{tpu_custom_call.1} parent=5 // pred_check
        %p294 = pneg %p293
      $region66: #{tpu_custom_call.1} parent=5 // pred_check_branch
        %296 = sbr.rel (%p294) target = $region68
      $region67: #{tpu_custom_call.1} parent=5 // pred_region
        %s297 = ssub.s32 %s17, 2
        // Predicated region
        $region69: #{tpu_custom_call.1} parent=67 // pred_check
          %p298 = pneg %p86
        $region70: #{tpu_custom_call.1} parent=67 // pred_check_branch
          %300 = sbr.rel (%p298) target = $region72
        $region71: #{tpu_custom_call.1} parent=67 // pred_region
          %s301 = sand.u32 %s71, 1
          %s302 = scalar_lea.sflag [#allocation8], %s301
          %s303 = sand.u32 %s71, 1
          %s304 = smul.addr %s303, 8
          %s305 = scalar_lea.vmem [#allocation9], %s304
          %306 = dma.done %s302, 128
        $region72: #{tpu_custom_call.1} parent=67 // pred_fallthru
          _
      $region68: #{tpu_custom_call.1} parent=5 // pred_fallthru
        _
    $region6: #{tpu_custom_call.1} parent=1 // loop_footer
      %s21 = sadd.s32 1, %s17
    $region7: #{tpu_custom_call.1} parent=1 // loop_footer_branch
      %16 = sbr.rel target = $region3
    $region8: #{tpu_custom_call.1} parent=1 // loop_exit
      _
    %307 = vsyncpa [#allocation7], 1
    %s308 = scalar_lea.sflag [#allocation7], 1
    %309 = vsyncpa %s308, 1
    %310 = vsyncpa [#allocation8], 1
    %s311 = scalar_lea.sflag [#allocation8], 1
    %312 = vsyncpa %s311, 1
  %313 = vsyncmov [#allocation3]
  %s314 = vpop.sfrf %313
  %p315 = scmp.eq.s32.totalorder %s314, 0
  %p316 = pneg %p315
  %318 = shalt.err (%p316)

</llo_original>
